<compile_context>
chip_gen: v7x
topology: tpu7x:2x2x1
jax: 0.10.0
libtpu: 0.0.40
codegen_flags: <defaults>
</compile_context>

<pallas_src>
import functools

import jax
import jax.numpy as jnp
from jax.experimental import pallas as pl
from jax.experimental.pallas import tpu as pltpu

LANE = 128


def _round_up(x, m):
    return (x + m - 1) // m * m


# ----------------------------- Pallas kernel -------------------------------- #

def _fused_multigcn_kernel(a_ref, x_ref, w_ref, b_ref, o_ref, *, relu_flags):
    """All GCN layers in one kernel invocation.

    a_ref : (Np, Np)     bf16  normalized adjacency (row/col zero-padded, Np % 128 == 0)
    x_ref : (Np, Fp)     bf16  input node features  (zero-padded lanes, Fp % 128 == 0)
    w_ref : (L, Fp, Fp)  bf16  per-layer weights    (zero-padded)
    b_ref : (L, 1, Fp)   f32   per-layer biases     (zero-padded)
    o_ref : (Np, Fp)     f32   last-layer output    (padded; sliced outside)
    """
    a = a_ref[...]                 # loaded once; resident in vregs/VMEM for all layers
    h = x_ref[...]                 # bf16 activation, never leaves VMEM
    n_layers = len(relu_flags)
    for l in range(n_layers):      # static unroll over layers
        xw = jnp.dot(h, w_ref[l], preferred_element_type=jnp.float32)
        out = jnp.dot(a, xw.astype(jnp.bfloat16),
                      preferred_element_type=jnp.float32)
        out = out + b_ref[l]       # (1, Fp) broadcasts over rows; f32 epilogue
        if relu_flags[l]:
            out = jnp.maximum(out, 0.0)
        if l == n_layers - 1:
            o_ref[...] = out       # lane-dense full store (Fp multiple of 128)
        else:
            h = out.astype(jnp.bfloat16)


# ------------------------------ jitted wrapper ------------------------------- #

@functools.partial(jax.jit, static_argnames=("relu_flags", "out_dim"))
def multigcn_forward(a_hat_pad, x, w_stack, b_stack, relu_flags, out_dim):
    """a_hat_pad: (Np, Np) bf16 (precomputed/hoisted). Returns (N, out_dim) f32."""
    n, f_in = x.shape
    n_pad = a_hat_pad.shape[0]
    n_layers, _, fpad = w_stack.shape

    x_pad = jnp.zeros((n_pad, fpad), jnp.bfloat16)
    x_pad = x_pad.at[:n, :f_in].set(x.astype(jnp.bfloat16))

    # Advisory cost hint for XLA's scheduler around the custom call.
    flops = 2 * n_layers * (n_pad * fpad * fpad + n_pad * n_pad * fpad)
    bytes_accessed = (n_pad * n_pad * 2 + n_pad * fpad * 2
                      + n_layers * fpad * fpad * 2 + n_layers * fpad * 4
                      + n_pad * fpad * 4)

    kernel = functools.partial(_fused_multigcn_kernel, relu_flags=relu_flags)
    out_pad = pl.pallas_call(
        kernel,
        out_shape=jax.ShapeDtypeStruct((n_pad, fpad), jnp.float32),
        grid=(1,),
        in_specs=[
            pl.BlockSpec((n_pad, n_pad), lambda i: (0, 0)),
            pl.BlockSpec((n_pad, fpad), lambda i: (0, 0)),
            pl.BlockSpec((n_layers, fpad, fpad), lambda i: (0, 0, 0)),
            pl.BlockSpec((n_layers, 1, fpad), lambda i: (0, 0, 0)),
        ],
        out_specs=pl.BlockSpec((n_pad, fpad), lambda i: (0, 0)),
        compiler_params=pltpu.CompilerParams(
            dimension_semantics=("arbitrary",)),
        cost_estimate=pl.CostEstimate(flops=flops, transcendentals=0,
                                      bytes_accessed=bytes_accessed),
    )(a_hat_pad, x_pad, w_stack, b_stack)
    return out_pad[:n, :out_dim]


# ------------------------------- glue (JAX) --------------------------------- #

def normalized_adjacency(edge_index, num_nodes):
    """Dense GCN normalization: D^{-1/2} (A + I) D^{-1/2}, A binary + undirected.

    Diagonal is forced to exactly 1 so pre-existing self-loops are not double-counted.
    """
    src, dst = edge_index
    a = jnp.zeros((num_nodes, num_nodes), jnp.float32)
    a = a.at[dst, src].set(1.0)          # source -> target
    a = a.at[src, dst].set(1.0)          # force undirected
    eye = jnp.eye(num_nodes, dtype=jnp.float32)
    a_hat = a * (1.0 - eye) + eye        # exactly one self-loop per node
    deg = jnp.sum(a_hat, axis=1)
    d_inv_sqrt = jnp.where(deg > 0, jax.lax.rsqrt(deg), 0.0)
    return a_hat * d_inv_sqrt[:, None] * d_inv_sqrt[None, :]


def glorot(key, shape):
    fan_in, fan_out = shape
    limit = jnp.sqrt(6.0 / (fan_in + fan_out))
    return jax.random.uniform(key, shape, jnp.float32, -limit, limit)


def make_multigcn_params(key, input_dim, hidden_dim, output_dim, n_layers):
    """Mirror MultiGCN._make_layer (GCNBlock variant); pack padded params for the kernel."""
    specs = []  # (f_in, f_out, relu)
    for i in range(n_layers - 1):                     # (n_layers - 1) GCNBlocks
        f_in = input_dim if i == 0 else hidden_dim
        f_out = output_dim if i == n_layers - 1 else hidden_dim
        specs.append((f_in, f_out, True))
    f_in_last = input_dim if n_layers == 1 else hidden_dim
    specs.append((f_in_last, output_dim, False))      # final plain GCNConv

    fpad = _round_up(max(max(fi, fo) for fi, fo, _ in specs), LANE)
    keys = jax.random.split(key, len(specs))
    w_list, b_list, relu_flags = [], [], []
    for k, (f_in, f_out, relu) in zip(keys, specs):
        w = glorot(k, (f_in, f_out))
        w_list.append(jnp.zeros((fpad, fpad), jnp.float32).at[:f_in, :f_out].set(w))
        b_list.append(jnp.zeros((1, fpad), jnp.float32))   # GCNConv bias init = 0
        relu_flags.append(relu)
    w_stack = jnp.stack(w_list).astype(jnp.bfloat16)        # (L, Fp, Fp)
    b_stack = jnp.stack(b_list)                             # (L, 1, Fp) f32
    return w_stack, b_stack, tuple(relu_flags), fpad


def multigcn_reference(a_hat_pad, x_pad, w_stack, b_stack, relu_flags):
    """Plain-JAX reference using the identical bf16/f32 compute path."""
    a = a_hat_pad
    h = x_pad
    out = None
    for l in range(w_stack.shape[0]):
        xw = jnp.dot(h, w_stack[l], preferred_element_type=jnp.float32)
        out = jnp.dot(a, xw.astype(jnp.bfloat16), preferred_element_type=jnp.float32)
        out = out + b_stack[l]
        if relu_flags[l]:
            out = jnp.maximum(out, 0.0)
        h = out.astype(jnp.bfloat16)
    return out


# --------------------------------- main -------------------------------------- #

if __name__ == "__main__":
    key = jax.random.PRNGKey(0)
    k_x, k_e, k_p = jax.random.split(key, 3)

    # small graph
    num_nodes, num_edges = 64, 128
    input_dim, hidden_dim, output_dim = 16, 32, 8
    n_layers = 3   # 2 GCNBlocks (conv+ReLU) + final GCNConv

    x = jax.random.normal(k_x, (num_nodes, input_dim), jnp.float32)
    edge_index = jax.random.randint(k_e, (2, num_edges), 0, num_nodes, jnp.int32)

    w_stack, b_stack, relu_flags, fpad = make_multigcn_params(
        k_p, input_dim, hidden_dim, output_dim, n_layers)

    # Hoisted: adjacency built ONCE (not per forward), padded to a LANE multiple, bf16.
    n_pad = _round_up(num_nodes, LANE)
    a_hat = normalized_adjacency(edge_index, num_nodes)
    a_hat_pad = jnp.zeros((n_pad, n_pad), jnp.float32)
    a_hat_pad = a_hat_pad.at[:num_nodes, :num_nodes].set(a_hat).astype(jnp.bfloat16)

    out = multigcn_forward(a_hat_pad, x, w_stack, b_stack, relu_flags, output_dim)
    out = jax.block_until_ready(out)

    assert out.shape == (num_nodes, output_dim)
    assert bool(jnp.all(jnp.isfinite(out)))

    # correctness check vs. plain-JAX reference on the same padded/bf16 inputs
    x_pad = jnp.zeros((n_pad, fpad), jnp.bfloat16)
    x_pad = x_pad.at[:num_nodes, :input_dim].set(x.astype(jnp.bfloat16))
    ref = multigcn_reference(a_hat_pad, x_pad, w_stack, b_stack, relu_flags)
    ref = ref[:num_nodes, :output_dim]
    assert bool(jnp.allclose(out, ref, rtol=1e-2, atol=1e-2))

    print("KERNEL_OK")
</pallas_src>

<mosaic_0001>
module attributes {stable_mosaic.version = 11 : i64} {
  func.func @_fused_multigcn_kernel(%arg0: i32, %arg1: memref<128x128xbf16, #tpu.memory_space<vmem>>, %arg2: memref<128x128xbf16, #tpu.memory_space<vmem>>, %arg3: memref<3x128x128xbf16, #tpu.memory_space<vmem>>, %arg4: memref<3x1x128xf32, #tpu.memory_space<vmem>>, %arg5: memref<128x128xf32, #tpu.memory_space<vmem>>) attributes {dimension_semantics = [#tpu.dimension_semantics<arbitrary>], iteration_bounds = array<i64: 1>, scalar_prefetch = 0 : i64, scratch_operands = 0 : i64, tpu.core_type = #tpu.core_type<tc>, window_params = [{pipeline_mode = #tpu.pipeline_mode<synchronous>, transform_indices = @transform_0, window_bounds = array<i64: 128, 128>}, {pipeline_mode = #tpu.pipeline_mode<synchronous>, transform_indices = @transform_1, window_bounds = array<i64: 128, 128>}, {pipeline_mode = #tpu.pipeline_mode<synchronous>, transform_indices = @transform_2, window_bounds = array<i64: 3, 128, 128>}, {pipeline_mode = #tpu.pipeline_mode<synchronous>, transform_indices = @transform_3, window_bounds = array<i64: 3, 1, 128>}, {pipeline_mode = #tpu.pipeline_mode<synchronous>, transform_indices = @transform_4, window_bounds = array<i64: 128, 128>}]} {
    %c0 = arith.constant 0 : index
    %c0_0 = arith.constant 0 : index
    %0 = vector.load %arg1[%c0, %c0_0] : memref<128x128xbf16, #tpu.memory_space<vmem>>, vector<128x128xbf16>
    %c0_1 = arith.constant 0 : index
    %c0_2 = arith.constant 0 : index
    %1 = vector.load %arg2[%c0_1, %c0_2] : memref<128x128xbf16, #tpu.memory_space<vmem>>, vector<128x128xbf16>
    %c0_3 = arith.constant 0 : index
    %c0_4 = arith.constant 0 : index
    %c0_5 = arith.constant 0 : index
    %2 = vector.load %arg3[%c0_3, %c0_4, %c0_5] : memref<3x128x128xbf16, #tpu.memory_space<vmem>>, vector<1x128x128xbf16>
    %3 = vector.shape_cast %2 : vector<1x128x128xbf16> to vector<128x128xbf16>
    %cst = arith.constant dense<0.000000e+00> : vector<128x128xf32>
    %4 = tpu.matmul %1, %3, %cst {dimension_numbers = #tpu.dot_dimension_numbers<[1], [0], [0], [1], [0, 0, 1, 1], [], []>} : vector<128x128xbf16>, vector<128x128xbf16>, vector<128x128xf32> -> vector<128x128xf32>
    %5 = arith.truncf %4 : vector<128x128xf32> to vector<128x128xbf16>
    %cst_6 = arith.constant dense<0.000000e+00> : vector<128x128xf32>
    %6 = tpu.matmul %0, %5, %cst_6 {dimension_numbers = #tpu.dot_dimension_numbers<[1], [0], [0], [1], [0, 0, 1, 1], [], []>} : vector<128x128xbf16>, vector<128x128xbf16>, vector<128x128xf32> -> vector<128x128xf32>
    %c0_7 = arith.constant 0 : index
    %c0_8 = arith.constant 0 : index
    %c0_9 = arith.constant 0 : index
    %7 = vector.load %arg4[%c0_7, %c0_8, %c0_9] : memref<3x1x128xf32, #tpu.memory_space<vmem>>, vector<1x1x128xf32>
    %8 = vector.shape_cast %7 : vector<1x1x128xf32> to vector<1x128xf32>
    %9 = vector.broadcast %8 : vector<1x128xf32> to vector<128x128xf32>
    %10 = arith.addf %6, %9 : vector<128x128xf32>
    %cst_10 = arith.constant 0.000000e+00 : f32
    %11 = vector.broadcast %cst_10 : f32 to vector<128x128xf32>
    %12 = arith.maximumf %10, %11 : vector<128x128xf32>
    %13 = arith.truncf %12 : vector<128x128xf32> to vector<128x128xbf16>
    %c1 = arith.constant 1 : index
    %c0_11 = arith.constant 0 : index
    %c0_12 = arith.constant 0 : index
    %14 = vector.load %arg3[%c1, %c0_11, %c0_12] : memref<3x128x128xbf16, #tpu.memory_space<vmem>>, vector<1x128x128xbf16>
    %15 = vector.shape_cast %14 : vector<1x128x128xbf16> to vector<128x128xbf16>
    %cst_13 = arith.constant dense<0.000000e+00> : vector<128x128xf32>
    %16 = tpu.matmul %13, %15, %cst_13 {dimension_numbers = #tpu.dot_dimension_numbers<[1], [0], [0], [1], [0, 0, 1, 1], [], []>} : vector<128x128xbf16>, vector<128x128xbf16>, vector<128x128xf32> -> vector<128x128xf32>
    %17 = arith.truncf %16 : vector<128x128xf32> to vector<128x128xbf16>
    %cst_14 = arith.constant dense<0.000000e+00> : vector<128x128xf32>
    %18 = tpu.matmul %0, %17, %cst_14 {dimension_numbers = #tpu.dot_dimension_numbers<[1], [0], [0], [1], [0, 0, 1, 1], [], []>} : vector<128x128xbf16>, vector<128x128xbf16>, vector<128x128xf32> -> vector<128x128xf32>
    %c1_15 = arith.constant 1 : index
    %c0_16 = arith.constant 0 : index
    %c0_17 = arith.constant 0 : index
    %19 = vector.load %arg4[%c1_15, %c0_16, %c0_17] : memref<3x1x128xf32, #tpu.memory_space<vmem>>, vector<1x1x128xf32>
    %20 = vector.shape_cast %19 : vector<1x1x128xf32> to vector<1x128xf32>
    %21 = vector.broadcast %20 : vector<1x128xf32> to vector<128x128xf32>
    %22 = arith.addf %18, %21 : vector<128x128xf32>
    %cst_18 = arith.constant 0.000000e+00 : f32
    %23 = vector.broadcast %cst_18 : f32 to vector<128x128xf32>
    %24 = arith.maximumf %22, %23 : vector<128x128xf32>
    %25 = arith.truncf %24 : vector<128x128xf32> to vector<128x128xbf16>
    %c2 = arith.constant 2 : index
    %c0_19 = arith.constant 0 : index
    %c0_20 = arith.constant 0 : index
    %26 = vector.load %arg3[%c2, %c0_19, %c0_20] : memref<3x128x128xbf16, #tpu.memory_space<vmem>>, vector<1x128x128xbf16>
    %27 = vector.shape_cast %26 : vector<1x128x128xbf16> to vector<128x128xbf16>
    %cst_21 = arith.constant dense<0.000000e+00> : vector<128x128xf32>
    %28 = tpu.matmul %25, %27, %cst_21 {dimension_numbers = #tpu.dot_dimension_numbers<[1], [0], [0], [1], [0, 0, 1, 1], [], []>} : vector<128x128xbf16>, vector<128x128xbf16>, vector<128x128xf32> -> vector<128x128xf32>
    %29 = arith.truncf %28 : vector<128x128xf32> to vector<128x128xbf16>
    %cst_22 = arith.constant dense<0.000000e+00> : vector<128x128xf32>
    %30 = tpu.matmul %0, %29, %cst_22 {dimension_numbers = #tpu.dot_dimension_numbers<[1], [0], [0], [1], [0, 0, 1, 1], [], []>} : vector<128x128xbf16>, vector<128x128xbf16>, vector<128x128xf32> -> vector<128x128xf32>
    %c2_23 = arith.constant 2 : index
    %c0_24 = arith.constant 0 : index
    %c0_25 = arith.constant 0 : index
    %31 = vector.load %arg4[%c2_23, %c0_24, %c0_25] : memref<3x1x128xf32, #tpu.memory_space<vmem>>, vector<1x1x128xf32>
    %32 = vector.shape_cast %31 : vector<1x1x128xf32> to vector<1x128xf32>
    %33 = vector.broadcast %32 : vector<1x128xf32> to vector<128x128xf32>
    %34 = arith.addf %30, %33 : vector<128x128xf32>
    %c0_26 = arith.constant 0 : index
    %c0_27 = arith.constant 0 : index
    %35 = vector.load %arg5[%c0_26, %c0_27] : memref<128x128xf32, #tpu.memory_space<vmem>>, vector<128x128xf32>
    tpu.vector_store %arg5[%c0_26, %c0_27], %34 {strides = array<i32>} : memref<128x128xf32, #tpu.memory_space<vmem>>, vector<128x128xf32>,
    return
  }
  func.func @transform_0(%arg0: i32) -> (i32, i32) {
    %c0_i32 = arith.constant 0 : i32
    %c0_i32_0 = arith.constant 0 : i32
    %c0_i32_1 = arith.constant 0 : i32
    return %c0_i32, %c0_i32_0 : i32, i32
  }
  func.func @transform_1(%arg0: i32) -> (i32, i32) {
    %c0_i32 = arith.constant 0 : i32
    %c0_i32_0 = arith.constant 0 : i32
    %c0_i32_1 = arith.constant 0 : i32
    return %c0_i32, %c0_i32_0 : i32, i32
  }
  func.func @transform_2(%arg0: i32) -> (i32, i32, i32) {
    %c0_i32 = arith.constant 0 : i32
    %c0_i32_0 = arith.constant 0 : i32
    %c0_i32_1 = arith.constant 0 : i32
    %c0_i32_2 = arith.constant 0 : i32
    return %c0_i32, %c0_i32_0, %c0_i32_1 : i32, i32, i32
  }
  func.func @transform_3(%arg0: i32) -> (i32, i32, i32) {
    %c0_i32 = arith.constant 0 : i32
    %c0_i32_0 = arith.constant 0 : i32
    %c0_i32_1 = arith.constant 0 : i32
    %c0_i32_2 = arith.constant 0 : i32
    return %c0_i32, %c0_i32_0, %c0_i32_1 : i32, i32, i32
  }
  func.func @transform_4(%arg0: i32) -> (i32, i32) {
    %c0_i32 = arith.constant 0 : i32
    %c0_i32_0 = arith.constant 0 : i32
    %c0_i32_1 = arith.constant 0 : i32
    return %c0_i32, %c0_i32_0 : i32, i32
  }
}

</mosaic_0001>

<llo_original>
// kernel: multigcn_forward.1
$region0: #{multigcn_forward.1}
  #allocation0 [shape = 'u32[]', space=smem, size = 0x4, offset = 0x4, fixed_abs, tag = 'smem constant byte address 0x4 - core index']
  #allocation1 [shape = 'u32[144,128]{1,0:T(1,128)}', space=vmem, size = 0x12000, scoped, tag = 'internal scratch']
  %s0 = inlined_call_operand.vmem [shape: bf16[128,128], index: 0, kind: input, shape index: {}]
  %s1 = inlined_call_operand.vmem [shape: bf16[128,128], index: 1, kind: input, shape index: {}]
  %s2 = inlined_call_operand.hbm [shape: bf16[3,128,128], index: 2, kind: input, shape index: {}]
  %s3 = inlined_call_operand.vmem [shape: f32[3,1,128], index: 3, kind: input, shape index: {}]
  %s4 = inlined_call_operand.vmem [shape: f32[128,128], index: 4, kind: output, shape index: {}]
  %s5 = sld [smem:[#allocation0]]
  $region30: #{multigcn_forward.1} parent=0
    _
  %s7 = ssub.s32 1, %s5
  %s8 = scalar_select 0, %s7, %s5
  $region1: #{multigcn_forward.1} parent=0
    #allocation2 [shape = 'u8[98304]{0}', space=vmem, size = 0x18000, scoped, tag = 'input window, operand 2, single buffered']
    #allocation3 [shape = 's32[1]{0}', space=sflag, size = 0x4, scoped, tag = 'scoped memory for multigcn_forward.1']
    %9 = vsyncpa [#allocation3], 0
    // Predicated region
    $region2: #{multigcn_forward.1} parent=1 // pred_check
      _
    $region3: #{multigcn_forward.1} parent=1 // pred_check_branch
      %11 = sbr.rel (0) target = $region5
    $region4: #{multigcn_forward.1} parent=1 // pred_region
      _
    $region5: #{multigcn_forward.1} parent=1 // pred_fallthru
      _
    // Predicated region
    $region6: #{multigcn_forward.1} parent=1 // pred_check
      _
    $region7: #{multigcn_forward.1} parent=1 // pred_check_branch
      %13 = sbr.rel (0) target = $region9
    $region8: #{multigcn_forward.1} parent=1 // pred_region
      _
    $region9: #{multigcn_forward.1} parent=1 // pred_fallthru
      _
    // Predicated region
    $region10: #{multigcn_forward.1} parent=1 // pred_check
      _
    $region11: #{multigcn_forward.1} parent=1 // pred_check_branch
      %15 = sbr.rel (0) target = $region13
    $region12: #{multigcn_forward.1} parent=1 // pred_region
      %s17 = ssub.s32 3072, 3072
      %18 = vsyncadd [#allocation3], %s17
      %s19 = sshll.u32 [#allocation2], 4
      %s20 = int_to_ptr.vmem [resolvable:$true] %s19
      %25 = dma.hbm_to_vmem [thread:$0]  %s2, 3072, %s20, [#allocation3], 64, 64, 4
    $region13: #{multigcn_forward.1} parent=1 // pred_fallthru
      _
    // Predicated region
    $region14: #{multigcn_forward.1} parent=1 // pred_check
      _
    $region15: #{multigcn_forward.1} parent=1 // pred_check_branch
      %27 = sbr.rel (0) target = $region17
    $region16: #{multigcn_forward.1} parent=1 // pred_region
      _
    $region17: #{multigcn_forward.1} parent=1 // pred_fallthru
      _
    // Predicated region
    $region18: #{multigcn_forward.1} parent=1 // pred_check
      _
    $region19: #{multigcn_forward.1} parent=1 // pred_check_branch
      %29 = sbr.rel (0) target = $region21
    $region20: #{multigcn_forward.1} parent=1 // pred_region
      %30 = dma.done [#allocation3], 3072
    $region21: #{multigcn_forward.1} parent=1 // pred_fallthru
      _
    %v32 = vld [vmem:[%s0] sm:$0xf]
    %v33 = vld [vmem:[%s0 + $0x4] sm:$0xf]
    %v34 = vld [vmem:[%s0 + $0x8] sm:$0xf]
    %v35 = vld [vmem:[%s0 + $0xc] sm:$0xf]
    %v36 = vld [vmem:[%s0 + $0x10] sm:$0xf]
    %v37 = vld [vmem:[%s0 + $0x14] sm:$0xf]
    %v38 = vld [vmem:[%s0 + $0x18] sm:$0xf]
    %v39 = vld [vmem:[%s0 + $0x1c] sm:$0xf]
    %v40 = vld [vmem:[%s0 + $0x20] sm:$0xf]
    %v41 = vld [vmem:[%s0 + $0x24] sm:$0xf]
    %v42 = vld [vmem:[%s0 + $0x28] sm:$0xf]
    %v43 = vld [vmem:[%s0 + $0x2c] sm:$0xf]
    %v44 = vld [vmem:[%s0 + $0x30] sm:$0xf]
    %v45 = vld [vmem:[%s0 + $0x34] sm:$0xf]
    %v46 = vld [vmem:[%s0 + $0x38] sm:$0xf]
    %v47 = vld [vmem:[%s0 + $0x3c] sm:$0xf]
    %v48 = vld [vmem:[%s1] sm:$0xf]
    %v49 = vld [vmem:[%s1 + $0x4] sm:$0xf]
    %v50 = vld [vmem:[%s1 + $0x8] sm:$0xf]
    %v51 = vld [vmem:[%s1 + $0xc] sm:$0xf]
    %v52 = vld [vmem:[%s1 + $0x10] sm:$0xf]
    %v53 = vld [vmem:[%s1 + $0x14] sm:$0xf]
    %v54 = vld [vmem:[%s1 + $0x18] sm:$0xf]
    %v55 = vld [vmem:[%s1 + $0x1c] sm:$0xf]
    %v56 = vld [vmem:[%s1 + $0x20] sm:$0xf]
    %v57 = vld [vmem:[%s1 + $0x24] sm:$0xf]
    %v58 = vld [vmem:[%s1 + $0x28] sm:$0xf]
    %v59 = vld [vmem:[%s1 + $0x2c] sm:$0xf]
    %v60 = vld [vmem:[%s1 + $0x30] sm:$0xf]
    %v61 = vld [vmem:[%s1 + $0x34] sm:$0xf]
    %v62 = vld [vmem:[%s1 + $0x38] sm:$0xf]
    %v63 = vld [vmem:[%s1 + $0x3c] sm:$0xf]
    %v64 = vld [vmem:[#allocation2] sm:$0xf]
    %v65 = vld [vmem:[#allocation2 + $0x4] sm:$0xf]
    %v66 = vld [vmem:[#allocation2 + $0x8] sm:$0xf]
    %v67 = vld [vmem:[#allocation2 + $0xc] sm:$0xf]
    %v68 = vld [vmem:[#allocation2 + $0x10] sm:$0xf]
    %v69 = vld [vmem:[#allocation2 + $0x14] sm:$0xf]
    %v70 = vld [vmem:[#allocation2 + $0x18] sm:$0xf]
    %v71 = vld [vmem:[#allocation2 + $0x1c] sm:$0xf]
    %v72 = vld [vmem:[#allocation2 + $0x20] sm:$0xf]
    %v73 = vld [vmem:[#allocation2 + $0x24] sm:$0xf]
    %v74 = vld [vmem:[#allocation2 + $0x28] sm:$0xf]
    %v75 = vld [vmem:[#allocation2 + $0x2c] sm:$0xf]
    %v76 = vld [vmem:[#allocation2 + $0x30] sm:$0xf]
    %v77 = vld [vmem:[#allocation2 + $0x34] sm:$0xf]
    %v78 = vld [vmem:[#allocation2 + $0x38] sm:$0xf]
    %v79 = vld [vmem:[#allocation2 + $0x3c] sm:$0xf]
    %v96 = vunpack.c.l.b16 %v48
    %v97 = vunpack.c.l.b16 %v49
    %v98 = vunpack.c.l.b16 %v50
    %v99 = vunpack.c.l.b16 %v51
    %v100 = vunpack.c.l.b16 %v52
    %v101 = vunpack.c.l.b16 %v53
    %v102 = vunpack.c.l.b16 %v54
    %v103 = vunpack.c.l.b16 %v55
    %v104 = vunpack.c.l.b16 %v56
    %v105 = vunpack.c.l.b16 %v57
    %v106 = vunpack.c.l.b16 %v58
    %v107 = vunpack.c.l.b16 %v59
    %v108 = vunpack.c.l.b16 %v60
    %v109 = vunpack.c.l.b16 %v61
    %v110 = vunpack.c.l.b16 %v62
    %v111 = vunpack.c.l.b16 %v63
    %v112 = vpack.c.b16 %v97, %v96
    %v113 = vpack.c.b16 %v99, %v98
    %v114 = vpack.c.b16 %v101, %v100
    %v115 = vpack.c.b16 %v103, %v102
    %v116 = vpack.c.b16 %v105, %v104
    %v117 = vpack.c.b16 %v107, %v106
    %v118 = vpack.c.b16 %v109, %v108
    %v119 = vpack.c.b16 %v111, %v110
    %v144 = vunpack.c.l.b16 %v64
    %v145 = vunpack.c.l.b16 %v65
    %v146 = vunpack.c.l.b16 %v66
    %v147 = vunpack.c.l.b16 %v67
    %v148 = vunpack.c.l.b16 %v68
    %v149 = vunpack.c.l.b16 %v69
    %v150 = vunpack.c.l.b16 %v70
    %v151 = vunpack.c.l.b16 %v71
    %v152 = vunpack.c.l.b16 %v72
    %v153 = vunpack.c.l.b16 %v73
    %v154 = vunpack.c.l.b16 %v74
    %v155 = vunpack.c.l.b16 %v75
    %v156 = vunpack.c.l.b16 %v76
    %v157 = vunpack.c.l.b16 %v77
    %v158 = vunpack.c.l.b16 %v78
    %v159 = vunpack.c.l.b16 %v79
    %v160 = vpack.c.b16 %v145, %v144
    %v161 = vpack.c.b16 %v147, %v146
    %v162 = vpack.c.b16 %v149, %v148
    %v163 = vpack.c.b16 %v151, %v150
    %v164 = vpack.c.b16 %v153, %v152
    %v165 = vpack.c.b16 %v155, %v154
    %v166 = vpack.c.b16 %v157, %v156
    %v167 = vpack.c.b16 %v159, %v158
    %176 = vmatprep.subr.bf16.mxu0 0
    %177 = vmatpush1.bf16.msra.mxu0 %v160
    %178 = vmatprep.subr.bf16.mxu0 0
    %179 = vmatpush1.bf16.msra.mxu0 %v161
    %180 = vmatprep.subr.bf16.mxu0 0
    %181 = vmatpush1.bf16.msra.mxu0 %v162
    %182 = vmatprep.subr.bf16.mxu0 0
    %183 = vmatpush1.bf16.msra.mxu0 %v163
    %184 = vmatprep.subr.bf16.mxu0 0
    %185 = vmatpush1.bf16.msra.mxu0 %v164
    %186 = vmatprep.subr.bf16.mxu0 0
    %187 = vmatpush1.bf16.msra.mxu0 %v165
    %188 = vmatprep.subr.bf16.mxu0 0
    %189 = vmatpush1.bf16.msra.mxu0 %v166
    %190 = vmatprep.subr.bf16.mxu0 0
    %191 = vmatpush1.bf16.msra.mxu0 %v167
    %192 = vmatprep.subr.bf16.mxu0 0
    %193 = vmatpush1.bf16.msra.mxu0 0
    %194 = vmatprep.subr.bf16.mxu0 0
    %195 = vmatpush1.bf16.msra.mxu0 0
    %196 = vmatprep.subr.bf16.mxu0 0
    %197 = vmatpush1.bf16.msra.mxu0 0
    %198 = vmatprep.subr.bf16.mxu0 0
    %199 = vmatpush1.bf16.msra.mxu0 0
    %200 = vmatprep.subr.bf16.mxu0 0
    %201 = vmatpush1.bf16.msra.mxu0 0
    %202 = vmatprep.subr.bf16.mxu0 0
    %203 = vmatpush1.bf16.msra.mxu0 0
    %204 = vmatprep.subr.bf16.mxu0 0
    %205 = vmatpush1.bf16.msra.mxu0 0
    %206 = vmatprep.subr.bf16.mxu0 0
    %207 = vmatpush1.bf16.msra.mxu0 0
    %208 = vmatprep.mubr.bf16.mxu0 0
    %209 = vmatmul.mubr.bf16.gmra.mrb[0].mxu0 %v112
    %v210 = vpop.f32.mrb[0].mxu0
    %v211 = vadd.f32 0.0, %v210
    %v212 = vpop.f32.mrb[0].mxu0
    %v213 = vpop.f32.mrb[0].mxu0
    %v214 = vadd.f32 0.0, %v213
    %v215 = vpop.f32.mrb[0].mxu0
    %216 = vmatprep.mubr.bf16.mxu0 0
    %217 = vmatmul.mubr.bf16.gmra.mrb[0].mxu0 %v113
    %v218 = vpop.f32.mrb[0].mxu0
    %v219 = vadd.f32 0.0, %v218
    %v220 = vpop.f32.mrb[0].mxu0
    %v221 = vpop.f32.mrb[0].mxu0
    %v222 = vadd.f32 0.0, %v221
    %v223 = vpop.f32.mrb[0].mxu0
    %224 = vmatprep.mubr.bf16.mxu0 0
    %225 = vmatmul.mubr.bf16.gmra.mrb[0].mxu0 %v114
    %v226 = vpop.f32.mrb[0].mxu0
    %v227 = vadd.f32 0.0, %v226
    %v228 = vpop.f32.mrb[0].mxu0
    %v229 = vpop.f32.mrb[0].mxu0
    %v230 = vadd.f32 0.0, %v229
    %v231 = vpop.f32.mrb[0].mxu0
    %232 = vmatprep.mubr.bf16.mxu0 0
    %233 = vmatmul.mubr.bf16.gmra.mrb[0].mxu0 %v115
    %v234 = vpop.f32.mrb[0].mxu0
    %v235 = vadd.f32 0.0, %v234
    %v236 = vpop.f32.mrb[0].mxu0
    %v237 = vpop.f32.mrb[0].mxu0
    %v238 = vadd.f32 0.0, %v237
    %v239 = vpop.f32.mrb[0].mxu0
    %240 = vmatprep.mubr.bf16.mxu0 0
    %241 = vmatmul.mubr.bf16.gmra.mrb[0].mxu0 %v116
    %v242 = vpop.f32.mrb[0].mxu0
    %v243 = vadd.f32 0.0, %v242
    %v244 = vpop.f32.mrb[0].mxu0
    %v245 = vpop.f32.mrb[0].mxu0
    %v246 = vadd.f32 0.0, %v245
    %v247 = vpop.f32.mrb[0].mxu0
    %248 = vmatprep.mubr.bf16.mxu0 0
    %249 = vmatmul.mubr.bf16.gmra.mrb[0].mxu0 %v117
    %v250 = vpop.f32.mrb[0].mxu0
    %v251 = vadd.f32 0.0, %v250
    %v252 = vpop.f32.mrb[0].mxu0
    %v253 = vpop.f32.mrb[0].mxu0
    %v254 = vadd.f32 0.0, %v253
    %v255 = vpop.f32.mrb[0].mxu0
    %256 = vmatprep.mubr.bf16.mxu0 0
    %257 = vmatmul.mubr.bf16.gmra.mrb[0].mxu0 %v118
    %v258 = vpop.f32.mrb[0].mxu0
    %v259 = vadd.f32 0.0, %v258
    %v260 = vpop.f32.mrb[0].mxu0
    %v261 = vpop.f32.mrb[0].mxu0
    %v262 = vadd.f32 0.0, %v261
    %v263 = vpop.f32.mrb[0].mxu0
    %264 = vmatprep.mubr.bf16.mxu0 0
    %265 = vmatmul.mubr.bf16.gmra.mrb[0].mxu0 %v119
    %v266 = vpop.f32.mrb[0].mxu0
    %v267 = vadd.f32 0.0, %v266
    %v268 = vpop.f32.mrb[0].mxu0
    %v269 = vpop.f32.mrb[0].mxu0
    %v270 = vadd.f32 0.0, %v269
    %v271 = vpop.f32.mrb[0].mxu0
    %272 = vdwg.mxu0
    %v273 = vpack.c.bf16 %v214, %v211
    %v274 = vpack.c.bf16 %v222, %v219
    %v275 = vpack.c.bf16 %v230, %v227
    %v276 = vpack.c.bf16 %v238, %v235
    %v277 = vpack.c.bf16 %v246, %v243
    %v278 = vpack.c.bf16 %v254, %v251
    %v279 = vpack.c.bf16 %v262, %v259
    %v280 = vpack.c.bf16 %v270, %v267
    %v281 = vld [vmem:[%s3] sm:$0x1]
    %v283 = vlaneseq
    %v284 = vshrl.u32 %v283, 7
    %v285 = vsub.s32 0, %v284
    %v286 = vrot.slane %v281, %v285
    %v304 = vunpack.c.l.b16 %v32
    %v305 = vunpack.c.l.b16 %v33
    %v306 = vunpack.c.l.b16 %v34
    %v307 = vunpack.c.l.b16 %v35
    %v308 = vunpack.c.l.b16 %v36
    %v309 = vunpack.c.l.b16 %v37
    %v310 = vunpack.c.l.b16 %v38
    %v311 = vunpack.c.l.b16 %v39
    %v312 = vunpack.c.l.b16 %v40
    %v313 = vunpack.c.l.b16 %v41
    %v314 = vunpack.c.l.b16 %v42
    %v315 = vunpack.c.l.b16 %v43
    %v316 = vunpack.c.l.b16 %v44
    %v317 = vunpack.c.l.b16 %v45
    %v318 = vunpack.c.l.b16 %v46
    %v319 = vunpack.c.l.b16 %v47
    %v320 = vpack.c.b16 %v305, %v304
    %v321 = vpack.c.b16 %v307, %v306
    %v322 = vpack.c.b16 %v309, %v308
    %v323 = vpack.c.b16 %v311, %v310
    %v324 = vpack.c.b16 %v313, %v312
    %v325 = vpack.c.b16 %v315, %v314
    %v326 = vpack.c.b16 %v317, %v316
    %v327 = vpack.c.b16 %v319, %v318
    %336 = vmatprep.subr.bf16.mxu0 0
    %337 = vmatpush1.bf16.msra.mxu0 %v273
    %338 = vmatprep.subr.bf16.mxu0 0
    %339 = vmatpush1.bf16.msra.mxu0 %v274
    %340 = vmatprep.subr.bf16.mxu0 0
    %341 = vmatpush1.bf16.msra.mxu0 %v275
    %342 = vmatprep.subr.bf16.mxu0 0
    %343 = vmatpush1.bf16.msra.mxu0 %v276
    %344 = vmatprep.subr.bf16.mxu0 0
    %345 = vmatpush1.bf16.msra.mxu0 %v277
    %346 = vmatprep.subr.bf16.mxu0 0
    %347 = vmatpush1.bf16.msra.mxu0 %v278
    %348 = vmatprep.subr.bf16.mxu0 0
    %349 = vmatpush1.bf16.msra.mxu0 %v279
    %350 = vmatprep.subr.bf16.mxu0 0
    %351 = vmatpush1.bf16.msra.mxu0 %v280
    %352 = vmatprep.subr.bf16.mxu0 0
    %353 = vmatpush1.bf16.msra.mxu0 0
    %354 = vmatprep.subr.bf16.mxu0 0
    %355 = vmatpush1.bf16.msra.mxu0 0
    %356 = vmatprep.subr.bf16.mxu0 0
    %357 = vmatpush1.bf16.msra.mxu0 0
    %358 = vmatprep.subr.bf16.mxu0 0
    %359 = vmatpush1.bf16.msra.mxu0 0
    %360 = vmatprep.subr.bf16.mxu0 0
    %361 = vmatpush1.bf16.msra.mxu0 0
    %362 = vmatprep.subr.bf16.mxu0 0
    %363 = vmatpush1.bf16.msra.mxu0 0
    %364 = vmatprep.subr.bf16.mxu0 0
    %365 = vmatpush1.bf16.msra.mxu0 0
    %366 = vmatprep.subr.bf16.mxu0 0
    %367 = vmatpush1.bf16.msra.mxu0 0
    %368 = vmatprep.mubr.bf16.mxu0 0
    %369 = vmatmul.mubr.bf16.gmra.mrb[0].mxu0 %v320
    %v370 = vpop.f32.mrb[0].mxu0
    %v371 = vadd.f32 %v286, %v370
    %v372 = vpop.f32.mrb[0].mxu0
    %v373 = vpop.f32.mrb[0].mxu0
    %v374 = vadd.f32 %v286, %v373
    %v375 = vpop.f32.mrb[0].mxu0
    %376 = vmatprep.mubr.bf16.mxu0 0
    %377 = vmatmul.mubr.bf16.gmra.mrb[0].mxu0 %v321
    %v378 = vpop.f32.mrb[0].mxu0
    %v379 = vadd.f32 %v286, %v378
    %v380 = vpop.f32.mrb[0].mxu0
    %v381 = vpop.f32.mrb[0].mxu0
    %v382 = vadd.f32 %v286, %v381
    %v383 = vpop.f32.mrb[0].mxu0
    %384 = vmatprep.mubr.bf16.mxu0 0
    %385 = vmatmul.mubr.bf16.gmra.mrb[0].mxu0 %v322
    %v386 = vpop.f32.mrb[0].mxu0
    %v387 = vadd.f32 %v286, %v386
    %v388 = vpop.f32.mrb[0].mxu0
    %v389 = vpop.f32.mrb[0].mxu0
    %v390 = vadd.f32 %v286, %v389
    %v391 = vpop.f32.mrb[0].mxu0
    %392 = vmatprep.mubr.bf16.mxu0 0
    %393 = vmatmul.mubr.bf16.gmra.mrb[0].mxu0 %v323
    %v394 = vpop.f32.mrb[0].mxu0
    %v395 = vadd.f32 %v286, %v394
    %v396 = vpop.f32.mrb[0].mxu0
    %v397 = vpop.f32.mrb[0].mxu0
    %v398 = vadd.f32 %v286, %v397
    %v399 = vpop.f32.mrb[0].mxu0
    %400 = vmatprep.mubr.bf16.mxu0 0
    %401 = vmatmul.mubr.bf16.gmra.mrb[0].mxu0 %v324
    %v402 = vpop.f32.mrb[0].mxu0
    %v403 = vadd.f32 %v286, %v402
    %v404 = vpop.f32.mrb[0].mxu0
    %v405 = vpop.f32.mrb[0].mxu0
    %v406 = vadd.f32 %v286, %v405
    %v407 = vpop.f32.mrb[0].mxu0
    %408 = vmatprep.mubr.bf16.mxu0 0
    %409 = vmatmul.mubr.bf16.gmra.mrb[0].mxu0 %v325
    %v410 = vpop.f32.mrb[0].mxu0
    %v411 = vadd.f32 %v286, %v410
    %v412 = vpop.f32.mrb[0].mxu0
    %v413 = vpop.f32.mrb[0].mxu0
    %v414 = vadd.f32 %v286, %v413
    %v415 = vpop.f32.mrb[0].mxu0
    %416 = vmatprep.mubr.bf16.mxu0 0
    %417 = vmatmul.mubr.bf16.gmra.mrb[0].mxu0 %v326
    %v418 = vpop.f32.mrb[0].mxu0
    %v419 = vadd.f32 %v286, %v418
    %v420 = vpop.f32.mrb[0].mxu0
    %v421 = vpop.f32.mrb[0].mxu0
    %v422 = vadd.f32 %v286, %v421
    %v423 = vpop.f32.mrb[0].mxu0
    %424 = vmatprep.mubr.bf16.mxu0 0
    %425 = vmatmul.mubr.bf16.gmra.mrb[0].mxu0 %v327
    %v426 = vpop.f32.mrb[0].mxu0
    %v427 = vadd.f32 %v286, %v426
    %v428 = vpop.f32.mrb[0].mxu0
    %v429 = vpop.f32.mrb[0].mxu0
    %v430 = vadd.f32 %v286, %v429
    %v431 = vpop.f32.mrb[0].mxu0
    %432 = vdwg.mxu0
    %v433 = vmax.f32 %v371, 0.0
    %v434 = vmax.f32 %v374, 0.0
    %v435 = vmax.f32 %v379, 0.0
    %v436 = vmax.f32 %v382, 0.0
    %v437 = vmax.f32 %v387, 0.0
    %v438 = vmax.f32 %v390, 0.0
    %v439 = vmax.f32 %v395, 0.0
    %v440 = vmax.f32 %v398, 0.0
    %v441 = vmax.f32 %v403, 0.0
    %v442 = vmax.f32 %v406, 0.0
    %v443 = vmax.f32 %v411, 0.0
    %v444 = vmax.f32 %v414, 0.0
    %v445 = vmax.f32 %v419, 0.0
    %v446 = vmax.f32 %v422, 0.0
    %v447 = vmax.f32 %v427, 0.0
    %v448 = vmax.f32 %v430, 0.0
    %v449 = vpack.c.bf16 %v434, %v433
    %v450 = vpack.c.bf16 %v436, %v435
    %v451 = vpack.c.bf16 %v438, %v437
    %v452 = vpack.c.bf16 %v440, %v439
    %v453 = vpack.c.bf16 %v442, %v441
    %v454 = vpack.c.bf16 %v444, %v443
    %v455 = vpack.c.bf16 %v446, %v445
    %v456 = vpack.c.bf16 %v448, %v447
    %s457 = scalar_lea.vmem [#allocation2], 64
    %v458 = vld [vmem:[%s457] sm:$0xf]
    %v459 = vld [vmem:[%s457 + $0x4] sm:$0xf]
    %v460 = vld [vmem:[%s457 + $0x8] sm:$0xf]
    %v461 = vld [vmem:[%s457 + $0xc] sm:$0xf]
    %v462 = vld [vmem:[%s457 + $0x10] sm:$0xf]
    %v463 = vld [vmem:[%s457 + $0x14] sm:$0xf]
    %v464 = vld [vmem:[%s457 + $0x18] sm:$0xf]
    %v465 = vld [vmem:[%s457 + $0x1c] sm:$0xf]
    %v466 = vld [vmem:[%s457 + $0x20] sm:$0xf]
    %v467 = vld [vmem:[%s457 + $0x24] sm:$0xf]
    %v468 = vld [vmem:[%s457 + $0x28] sm:$0xf]
    %v469 = vld [vmem:[%s457 + $0x2c] sm:$0xf]
    %v470 = vld [vmem:[%s457 + $0x30] sm:$0xf]
    %v471 = vld [vmem:[%s457 + $0x34] sm:$0xf]
    %v472 = vld [vmem:[%s457 + $0x38] sm:$0xf]
    %v473 = vld [vmem:[%s457 + $0x3c] sm:$0xf]
    %v490 = vunpack.c.l.b16 %v458
    %v491 = vunpack.c.l.b16 %v459
    %v492 = vunpack.c.l.b16 %v460
    %v493 = vunpack.c.l.b16 %v461
    %v494 = vunpack.c.l.b16 %v462
    %v495 = vunpack.c.l.b16 %v463
    %v496 = vunpack.c.l.b16 %v464
    %v497 = vunpack.c.l.b16 %v465
    %v498 = vunpack.c.l.b16 %v466
    %v499 = vunpack.c.l.b16 %v467
    %v500 = vunpack.c.l.b16 %v468
    %v501 = vunpack.c.l.b16 %v469
    %v502 = vunpack.c.l.b16 %v470
    %v503 = vunpack.c.l.b16 %v471
    %v504 = vunpack.c.l.b16 %v472
    %v505 = vunpack.c.l.b16 %v473
    %v506 = vpack.c.b16 %v491, %v490
    %v507 = vpack.c.b16 %v493, %v492
    %v508 = vpack.c.b16 %v495, %v494
    %v509 = vpack.c.b16 %v497, %v496
    %v510 = vpack.c.b16 %v499, %v498
    %v511 = vpack.c.b16 %v501, %v500
    %v512 = vpack.c.b16 %v503, %v502
    %v513 = vpack.c.b16 %v505, %v504
    %522 = vmatprep.subr.bf16.mxu0 0
    %523 = vmatpush1.bf16.msra.mxu0 %v506
    %524 = vmatprep.subr.bf16.mxu0 0
    %525 = vmatpush1.bf16.msra.mxu0 %v507
    %526 = vmatprep.subr.bf16.mxu0 0
    %527 = vmatpush1.bf16.msra.mxu0 %v508
    %528 = vmatprep.subr.bf16.mxu0 0
    %529 = vmatpush1.bf16.msra.mxu0 %v509
    %530 = vmatprep.subr.bf16.mxu0 0
    %531 = vmatpush1.bf16.msra.mxu0 %v510
    %532 = vmatprep.subr.bf16.mxu0 0
    %533 = vmatpush1.bf16.msra.mxu0 %v511
    %534 = vmatprep.subr.bf16.mxu0 0
    %535 = vmatpush1.bf16.msra.mxu0 %v512
    %536 = vmatprep.subr.bf16.mxu0 0
    %537 = vmatpush1.bf16.msra.mxu0 %v513
    %538 = vmatprep.subr.bf16.mxu0 0
    %539 = vmatpush1.bf16.msra.mxu0 0
    %540 = vmatprep.subr.bf16.mxu0 0
    %541 = vmatpush1.bf16.msra.mxu0 0
    %542 = vmatprep.subr.bf16.mxu0 0
    %543 = vmatpush1.bf16.msra.mxu0 0
    %544 = vmatprep.subr.bf16.mxu0 0
    %545 = vmatpush1.bf16.msra.mxu0 0
    %546 = vmatprep.subr.bf16.mxu0 0
    %547 = vmatpush1.bf16.msra.mxu0 0
    %548 = vmatprep.subr.bf16.mxu0 0
    %549 = vmatpush1.bf16.msra.mxu0 0
    %550 = vmatprep.subr.bf16.mxu0 0
    %551 = vmatpush1.bf16.msra.mxu0 0
    %552 = vmatprep.subr.bf16.mxu0 0
    %553 = vmatpush1.bf16.msra.mxu0 0
    %554 = vmatprep.mubr.bf16.mxu0 0
    %555 = vmatmul.mubr.bf16.gmra.mrb[0].mxu0 %v449
    %v556 = vpop.f32.mrb[0].mxu0
    %v557 = vadd.f32 0.0, %v556
    %v558 = vpop.f32.mrb[0].mxu0
    %v559 = vpop.f32.mrb[0].mxu0
    %v560 = vadd.f32 0.0, %v559
    %v561 = vpop.f32.mrb[0].mxu0
    %562 = vmatprep.mubr.bf16.mxu0 0
    %563 = vmatmul.mubr.bf16.gmra.mrb[0].mxu0 %v450
    %v564 = vpop.f32.mrb[0].mxu0
    %v565 = vadd.f32 0.0, %v564
    %v566 = vpop.f32.mrb[0].mxu0
    %v567 = vpop.f32.mrb[0].mxu0
    %v568 = vadd.f32 0.0, %v567
    %v569 = vpop.f32.mrb[0].mxu0
    %570 = vmatprep.mubr.bf16.mxu0 0
    %571 = vmatmul.mubr.bf16.gmra.mrb[0].mxu0 %v451
    %v572 = vpop.f32.mrb[0].mxu0
    %v573 = vadd.f32 0.0, %v572
    %v574 = vpop.f32.mrb[0].mxu0
    %v575 = vpop.f32.mrb[0].mxu0
    %v576 = vadd.f32 0.0, %v575
    %v577 = vpop.f32.mrb[0].mxu0
    %578 = vmatprep.mubr.bf16.mxu0 0
    %579 = vmatmul.mubr.bf16.gmra.mrb[0].mxu0 %v452
    %v580 = vpop.f32.mrb[0].mxu0
    %v581 = vadd.f32 0.0, %v580
    %v582 = vpop.f32.mrb[0].mxu0
    %v583 = vpop.f32.mrb[0].mxu0
    %v584 = vadd.f32 0.0, %v583
    %v585 = vpop.f32.mrb[0].mxu0
    %586 = vmatprep.mubr.bf16.mxu0 0
    %587 = vmatmul.mubr.bf16.gmra.mrb[0].mxu0 %v453
    %v588 = vpop.f32.mrb[0].mxu0
    %v589 = vadd.f32 0.0, %v588
    %v590 = vpop.f32.mrb[0].mxu0
    %v591 = vpop.f32.mrb[0].mxu0
    %v592 = vadd.f32 0.0, %v591
    %v593 = vpop.f32.mrb[0].mxu0
    %594 = vmatprep.mubr.bf16.mxu0 0
    %595 = vmatmul.mubr.bf16.gmra.mrb[0].mxu0 %v454
    %v596 = vpop.f32.mrb[0].mxu0
    %v597 = vadd.f32 0.0, %v596
    %v598 = vpop.f32.mrb[0].mxu0
    %v599 = vpop.f32.mrb[0].mxu0
    %v600 = vadd.f32 0.0, %v599
    %v601 = vpop.f32.mrb[0].mxu0
    %602 = vmatprep.mubr.bf16.mxu0 0
    %603 = vmatmul.mubr.bf16.gmra.mrb[0].mxu0 %v455
    %v604 = vpop.f32.mrb[0].mxu0
    %v605 = vadd.f32 0.0, %v604
    %v606 = vpop.f32.mrb[0].mxu0
    %v607 = vpop.f32.mrb[0].mxu0
    %v608 = vadd.f32 0.0, %v607
    %v609 = vpop.f32.mrb[0].mxu0
    %610 = vmatprep.mubr.bf16.mxu0 0
    %611 = vmatmul.mubr.bf16.gmra.mrb[0].mxu0 %v456
    %v612 = vpop.f32.mrb[0].mxu0
    %v613 = vadd.f32 0.0, %v612
    %v614 = vpop.f32.mrb[0].mxu0
    %v615 = vpop.f32.mrb[0].mxu0
    %v616 = vadd.f32 0.0, %v615
    %v617 = vpop.f32.mrb[0].mxu0
    %618 = vdwg.mxu0
    %v619 = vpack.c.bf16 %v560, %v557
    %v620 = vpack.c.bf16 %v568, %v565
    %v621 = vpack.c.bf16 %v576, %v573
    %v622 = vpack.c.bf16 %v584, %v581
    %v623 = vpack.c.bf16 %v592, %v589
    %v624 = vpack.c.bf16 %v600, %v597
    %v625 = vpack.c.bf16 %v608, %v605
    %v626 = vpack.c.bf16 %v616, %v613
    %s627 = scalar_lea.vmem %s3, 1
    %v628 = vld [vmem:[%s627] sm:$0x1]
    %v630 = vlaneseq
    %v631 = vshrl.u32 %v630, 7
    %v632 = vsub.s32 0, %v631
    %v633 = vrot.slane %v628, %v632
    %635 = vmatprep.subr.bf16.mxu0 0
    %636 = vmatpush1.bf16.msra.mxu0 %v619
    %637 = vmatprep.subr.bf16.mxu0 0
    %638 = vmatpush1.bf16.msra.mxu0 %v620
    %639 = vmatprep.subr.bf16.mxu0 0
    %640 = vmatpush1.bf16.msra.mxu0 %v621
    %641 = vmatprep.subr.bf16.mxu0 0
    %642 = vmatpush1.bf16.msra.mxu0 %v622
    %643 = vmatprep.subr.bf16.mxu0 0
    %644 = vmatpush1.bf16.msra.mxu0 %v623
    %645 = vmatprep.subr.bf16.mxu0 0
    %646 = vmatpush1.bf16.msra.mxu0 %v624
    %647 = vmatprep.subr.bf16.mxu0 0
    %648 = vmatpush1.bf16.msra.mxu0 %v625
    %649 = vmatprep.subr.bf16.mxu0 0
    %650 = vmatpush1.bf16.msra.mxu0 %v626
    %651 = vmatprep.subr.bf16.mxu0 0
    %652 = vmatpush1.bf16.msra.mxu0 0
    %653 = vmatprep.subr.bf16.mxu0 0
    %654 = vmatpush1.bf16.msra.mxu0 0
    %655 = vmatprep.subr.bf16.mxu0 0
    %656 = vmatpush1.bf16.msra.mxu0 0
    %657 = vmatprep.subr.bf16.mxu0 0
    %658 = vmatpush1.bf16.msra.mxu0 0
    %659 = vmatprep.subr.bf16.mxu0 0
    %660 = vmatpush1.bf16.msra.mxu0 0
    %661 = vmatprep.subr.bf16.mxu0 0
    %662 = vmatpush1.bf16.msra.mxu0 0
    %663 = vmatprep.subr.bf16.mxu0 0
    %664 = vmatpush1.bf16.msra.mxu0 0
    %665 = vmatprep.subr.bf16.mxu0 0
    %666 = vmatpush1.bf16.msra.mxu0 0
    %667 = vmatprep.mubr.bf16.mxu0 0
    %668 = vmatmul.mubr.bf16.gmra.mrb[0].mxu0 %v320
    %v669 = vpop.f32.mrb[0].mxu0
    %v670 = vadd.f32 %v633, %v669
    %v671 = vpop.f32.mrb[0].mxu0
    %v672 = vpop.f32.mrb[0].mxu0
    %v673 = vadd.f32 %v633, %v672
    %v674 = vpop.f32.mrb[0].mxu0
    %675 = vmatprep.mubr.bf16.mxu0 0
    %676 = vmatmul.mubr.bf16.gmra.mrb[0].mxu0 %v321
    %v677 = vpop.f32.mrb[0].mxu0
    %v678 = vadd.f32 %v633, %v677
    %v679 = vpop.f32.mrb[0].mxu0
    %v680 = vpop.f32.mrb[0].mxu0
    %v681 = vadd.f32 %v633, %v680
    %v682 = vpop.f32.mrb[0].mxu0
    %683 = vmatprep.mubr.bf16.mxu0 0
    %684 = vmatmul.mubr.bf16.gmra.mrb[0].mxu0 %v322
    %v685 = vpop.f32.mrb[0].mxu0
    %v686 = vadd.f32 %v633, %v685
    %v687 = vpop.f32.mrb[0].mxu0
    %v688 = vpop.f32.mrb[0].mxu0
    %v689 = vadd.f32 %v633, %v688
    %v690 = vpop.f32.mrb[0].mxu0
    %691 = vmatprep.mubr.bf16.mxu0 0
    %692 = vmatmul.mubr.bf16.gmra.mrb[0].mxu0 %v323
    %v693 = vpop.f32.mrb[0].mxu0
    %v694 = vadd.f32 %v633, %v693
    %v695 = vpop.f32.mrb[0].mxu0
    %v696 = vpop.f32.mrb[0].mxu0
    %v697 = vadd.f32 %v633, %v696
    %v698 = vpop.f32.mrb[0].mxu0
    %699 = vmatprep.mubr.bf16.mxu0 0
    %700 = vmatmul.mubr.bf16.gmra.mrb[0].mxu0 %v324
    %v701 = vpop.f32.mrb[0].mxu0
    %v702 = vadd.f32 %v633, %v701
    %v703 = vpop.f32.mrb[0].mxu0
    %v704 = vpop.f32.mrb[0].mxu0
    %v705 = vadd.f32 %v633, %v704
    %v706 = vpop.f32.mrb[0].mxu0
    %707 = vmatprep.mubr.bf16.mxu0 0
    %708 = vmatmul.mubr.bf16.gmra.mrb[0].mxu0 %v325
    %v709 = vpop.f32.mrb[0].mxu0
    %v710 = vadd.f32 %v633, %v709
    %v711 = vpop.f32.mrb[0].mxu0
    %v712 = vpop.f32.mrb[0].mxu0
    %v713 = vadd.f32 %v633, %v712
    %v714 = vpop.f32.mrb[0].mxu0
    %715 = vmatprep.mubr.bf16.mxu0 0
    %716 = vmatmul.mubr.bf16.gmra.mrb[0].mxu0 %v326
    %v717 = vpop.f32.mrb[0].mxu0
    %v718 = vadd.f32 %v633, %v717
    %v719 = vpop.f32.mrb[0].mxu0
    %v720 = vpop.f32.mrb[0].mxu0
    %v721 = vadd.f32 %v633, %v720
    %v722 = vpop.f32.mrb[0].mxu0
    %723 = vmatprep.mubr.bf16.mxu0 0
    %724 = vmatmul.mubr.bf16.gmra.mrb[0].mxu0 %v327
    %v725 = vpop.f32.mrb[0].mxu0
    %v726 = vadd.f32 %v633, %v725
    %v727 = vpop.f32.mrb[0].mxu0
    %v728 = vpop.f32.mrb[0].mxu0
    %v729 = vadd.f32 %v633, %v728
    %v730 = vpop.f32.mrb[0].mxu0
    %731 = vdwg.mxu0
    %v732 = vmax.f32 %v670, 0.0
    %v733 = vmax.f32 %v673, 0.0
    %v734 = vmax.f32 %v678, 0.0
    %v735 = vmax.f32 %v681, 0.0
    %v736 = vmax.f32 %v686, 0.0
    %v737 = vmax.f32 %v689, 0.0
    %v738 = vmax.f32 %v694, 0.0
    %v739 = vmax.f32 %v697, 0.0
    %v740 = vmax.f32 %v702, 0.0
    %v741 = vmax.f32 %v705, 0.0
    %v742 = vmax.f32 %v710, 0.0
    %v743 = vmax.f32 %v713, 0.0
    %v744 = vmax.f32 %v718, 0.0
    %v745 = vmax.f32 %v721, 0.0
    %v746 = vmax.f32 %v726, 0.0
    %v747 = vmax.f32 %v729, 0.0
    %v748 = vpack.c.bf16 %v733, %v732
    %v749 = vpack.c.bf16 %v735, %v734
    %v750 = vpack.c.bf16 %v737, %v736
    %v751 = vpack.c.bf16 %v739, %v738
    %v752 = vpack.c.bf16 %v741, %v740
    %v753 = vpack.c.bf16 %v743, %v742
    %v754 = vpack.c.bf16 %v745, %v744
    %v755 = vpack.c.bf16 %v747, %v746
    %s756 = scalar_lea.vmem [#allocation2], 128
    %v757 = vld [vmem:[%s756] sm:$0xf]
    %v758 = vld [vmem:[%s756 + $0x4] sm:$0xf]
    %v759 = vld [vmem:[%s756 + $0x8] sm:$0xf]
    %v760 = vld [vmem:[%s756 + $0xc] sm:$0xf]
    %v761 = vld [vmem:[%s756 + $0x10] sm:$0xf]
    %v762 = vld [vmem:[%s756 + $0x14] sm:$0xf]
    %v763 = vld [vmem:[%s756 + $0x18] sm:$0xf]
    %v764 = vld [vmem:[%s756 + $0x1c] sm:$0xf]
    %v765 = vld [vmem:[%s756 + $0x20] sm:$0xf]
    %v766 = vld [vmem:[%s756 + $0x24] sm:$0xf]
    %v767 = vld [vmem:[%s756 + $0x28] sm:$0xf]
    %v768 = vld [vmem:[%s756 + $0x2c] sm:$0xf]
    %v769 = vld [vmem:[%s756 + $0x30] sm:$0xf]
    %v770 = vld [vmem:[%s756 + $0x34] sm:$0xf]
    %v771 = vld [vmem:[%s756 + $0x38] sm:$0xf]
    %v772 = vld [vmem:[%s756 + $0x3c] sm:$0xf]
    %v789 = vunpack.c.l.b16 %v757
    %v790 = vunpack.c.l.b16 %v758
    %v791 = vunpack.c.l.b16 %v759
    %v792 = vunpack.c.l.b16 %v760
    %v793 = vunpack.c.l.b16 %v761
    %v794 = vunpack.c.l.b16 %v762
    %v795 = vunpack.c.l.b16 %v763
    %v796 = vunpack.c.l.b16 %v764
    %v797 = vunpack.c.l.b16 %v765
    %v798 = vunpack.c.l.b16 %v766
    %v799 = vunpack.c.l.b16 %v767
    %v800 = vunpack.c.l.b16 %v768
    %v801 = vunpack.c.l.b16 %v769
    %v802 = vunpack.c.l.b16 %v770
    %v803 = vunpack.c.l.b16 %v771
    %v804 = vunpack.c.l.b16 %v772
    %v805 = vpack.c.b16 %v790, %v789
    %v806 = vpack.c.b16 %v792, %v791
    %v807 = vpack.c.b16 %v794, %v793
    %v808 = vpack.c.b16 %v796, %v795
    %v809 = vpack.c.b16 %v798, %v797
    %v810 = vpack.c.b16 %v800, %v799
    %v811 = vpack.c.b16 %v802, %v801
    %v812 = vpack.c.b16 %v804, %v803
    %821 = vmatprep.subr.bf16.mxu0 0
    %822 = vmatpush1.bf16.msra.mxu0 %v805
    %823 = vmatprep.subr.bf16.mxu0 0
    %824 = vmatpush1.bf16.msra.mxu0 %v806
    %825 = vmatprep.subr.bf16.mxu0 0
    %826 = vmatpush1.bf16.msra.mxu0 %v807
    %827 = vmatprep.subr.bf16.mxu0 0
    %828 = vmatpush1.bf16.msra.mxu0 %v808
    %829 = vmatprep.subr.bf16.mxu0 0
    %830 = vmatpush1.bf16.msra.mxu0 %v809
    %831 = vmatprep.subr.bf16.mxu0 0
    %832 = vmatpush1.bf16.msra.mxu0 %v810
    %833 = vmatprep.subr.bf16.mxu0 0
    %834 = vmatpush1.bf16.msra.mxu0 %v811
    %835 = vmatprep.subr.bf16.mxu0 0
    %836 = vmatpush1.bf16.msra.mxu0 %v812
    %837 = vmatprep.subr.bf16.mxu0 0
    %838 = vmatpush1.bf16.msra.mxu0 0
    %839 = vmatprep.subr.bf16.mxu0 0
    %840 = vmatpush1.bf16.msra.mxu0 0
    %841 = vmatprep.subr.bf16.mxu0 0
    %842 = vmatpush1.bf16.msra.mxu0 0
    %843 = vmatprep.subr.bf16.mxu0 0
    %844 = vmatpush1.bf16.msra.mxu0 0
    %845 = vmatprep.subr.bf16.mxu0 0
    %846 = vmatpush1.bf16.msra.mxu0 0
    %847 = vmatprep.subr.bf16.mxu0 0
    %848 = vmatpush1.bf16.msra.mxu0 0
    %849 = vmatprep.subr.bf16.mxu0 0
    %850 = vmatpush1.bf16.msra.mxu0 0
    %851 = vmatprep.subr.bf16.mxu0 0
    %852 = vmatpush1.bf16.msra.mxu0 0
    %853 = vmatprep.mubr.bf16.mxu0 0
    %854 = vmatmul.mubr.bf16.gmra.mrb[0].mxu0 %v748
    %v855 = vpop.f32.mrb[0].mxu0
    %v856 = vadd.f32 0.0, %v855
    %v857 = vpop.f32.mrb[0].mxu0
    %v858 = vpop.f32.mrb[0].mxu0
    %v859 = vadd.f32 0.0, %v858
    %v860 = vpop.f32.mrb[0].mxu0
    %861 = vmatprep.mubr.bf16.mxu0 0
    %862 = vmatmul.mubr.bf16.gmra.mrb[0].mxu0 %v749
    %v863 = vpop.f32.mrb[0].mxu0
    %v864 = vadd.f32 0.0, %v863
    %v865 = vpop.f32.mrb[0].mxu0
    %v866 = vpop.f32.mrb[0].mxu0
    %v867 = vadd.f32 0.0, %v866
    %v868 = vpop.f32.mrb[0].mxu0
    %869 = vmatprep.mubr.bf16.mxu0 0
    %870 = vmatmul.mubr.bf16.gmra.mrb[0].mxu0 %v750
    %v871 = vpop.f32.mrb[0].mxu0
    %v872 = vadd.f32 0.0, %v871
    %v873 = vpop.f32.mrb[0].mxu0
    %v874 = vpop.f32.mrb[0].mxu0
    %v875 = vadd.f32 0.0, %v874
    %v876 = vpop.f32.mrb[0].mxu0
    %877 = vmatprep.mubr.bf16.mxu0 0
    %878 = vmatmul.mubr.bf16.gmra.mrb[0].mxu0 %v751
    %v879 = vpop.f32.mrb[0].mxu0
    %v880 = vadd.f32 0.0, %v879
    %v881 = vpop.f32.mrb[0].mxu0
    %v882 = vpop.f32.mrb[0].mxu0
    %v883 = vadd.f32 0.0, %v882
    %v884 = vpop.f32.mrb[0].mxu0
    %885 = vmatprep.mubr.bf16.mxu0 0
    %886 = vmatmul.mubr.bf16.gmra.mrb[0].mxu0 %v752
    %v887 = vpop.f32.mrb[0].mxu0
    %v888 = vadd.f32 0.0, %v887
    %v889 = vpop.f32.mrb[0].mxu0
    %v890 = vpop.f32.mrb[0].mxu0
    %v891 = vadd.f32 0.0, %v890
    %v892 = vpop.f32.mrb[0].mxu0
    %893 = vmatprep.mubr.bf16.mxu0 0
    %894 = vmatmul.mubr.bf16.gmra.mrb[0].mxu0 %v753
    %v895 = vpop.f32.mrb[0].mxu0
    %v896 = vadd.f32 0.0, %v895
    %v897 = vpop.f32.mrb[0].mxu0
    %v898 = vpop.f32.mrb[0].mxu0
    %v899 = vadd.f32 0.0, %v898
    %v900 = vpop.f32.mrb[0].mxu0
    %901 = vmatprep.mubr.bf16.mxu0 0
    %902 = vmatmul.mubr.bf16.gmra.mrb[0].mxu0 %v754
    %v903 = vpop.f32.mrb[0].mxu0
    %v904 = vadd.f32 0.0, %v903
    %v905 = vpop.f32.mrb[0].mxu0
    %v906 = vpop.f32.mrb[0].mxu0
    %v907 = vadd.f32 0.0, %v906
    %v908 = vpop.f32.mrb[0].mxu0
    %909 = vmatprep.mubr.bf16.mxu0 0
    %910 = vmatmul.mubr.bf16.gmra.mrb[0].mxu0 %v755
    %v911 = vpop.f32.mrb[0].mxu0
    %v912 = vadd.f32 0.0, %v911
    %v913 = vpop.f32.mrb[0].mxu0
    %v914 = vpop.f32.mrb[0].mxu0
    %v915 = vadd.f32 0.0, %v914
    %v916 = vpop.f32.mrb[0].mxu0
    %917 = vdwg.mxu0
    %v918 = vpack.c.bf16 %v859, %v856
    %v919 = vpack.c.bf16 %v867, %v864
    %v920 = vpack.c.bf16 %v875, %v872
    %v921 = vpack.c.bf16 %v883, %v880
    %v922 = vpack.c.bf16 %v891, %v888
    %v923 = vpack.c.bf16 %v899, %v896
    %v924 = vpack.c.bf16 %v907, %v904
    %v925 = vpack.c.bf16 %v915, %v912
    %s926 = scalar_lea.vmem %s3, 2
    %v927 = vld [vmem:[%s926] sm:$0x1]
    %v929 = vlaneseq
    %v930 = vshrl.u32 %v929, 7
    %v931 = vsub.s32 0, %v930
    %v932 = vrot.slane %v927, %v931
    %934 = vmatprep.subr.bf16.mxu0 0
    %935 = vmatpush1.bf16.msra.mxu0 %v918
    %936 = vmatprep.subr.bf16.mxu0 0
    %937 = vmatpush1.bf16.msra.mxu0 %v919
    %938 = vmatprep.subr.bf16.mxu0 0
    %939 = vmatpush1.bf16.msra.mxu0 %v920
    %940 = vmatprep.subr.bf16.mxu0 0
    %941 = vmatpush1.bf16.msra.mxu0 %v921
    %942 = vmatprep.subr.bf16.mxu0 0
    %943 = vmatpush1.bf16.msra.mxu0 %v922
    %944 = vmatprep.subr.bf16.mxu0 0
    %945 = vmatpush1.bf16.msra.mxu0 %v923
    %946 = vmatprep.subr.bf16.mxu0 0
    %947 = vmatpush1.bf16.msra.mxu0 %v924
    %948 = vmatprep.subr.bf16.mxu0 0
    %949 = vmatpush1.bf16.msra.mxu0 %v925
    %950 = vmatprep.subr.bf16.mxu0 0
    %951 = vmatpush1.bf16.msra.mxu0 0
    %952 = vmatprep.subr.bf16.mxu0 0
    %953 = vmatpush1.bf16.msra.mxu0 0
    %954 = vmatprep.subr.bf16.mxu0 0
    %955 = vmatpush1.bf16.msra.mxu0 0
    %956 = vmatprep.subr.bf16.mxu0 0
    %957 = vmatpush1.bf16.msra.mxu0 0
    %958 = vmatprep.subr.bf16.mxu0 0
    %959 = vmatpush1.bf16.msra.mxu0 0
    %960 = vmatprep.subr.bf16.mxu0 0
    %961 = vmatpush1.bf16.msra.mxu0 0
    %962 = vmatprep.subr.bf16.mxu0 0
    %963 = vmatpush1.bf16.msra.mxu0 0
    %964 = vmatprep.subr.bf16.mxu0 0
    %965 = vmatpush1.bf16.msra.mxu0 0
    %966 = vmatprep.mubr.bf16.mxu0 0
    %967 = vmatmul.mubr.bf16.gmra.mrb[0].mxu0 %v320
    %v968 = vpop.f32.mrb[0].mxu0
    %v969 = vadd.f32 %v932, %v968
    %v970 = vpop.f32.mrb[0].mxu0
    %v971 = vpop.f32.mrb[0].mxu0
    %v972 = vadd.f32 %v932, %v971
    %v973 = vpop.f32.mrb[0].mxu0
    %974 = vmatprep.mubr.bf16.mxu0 0
    %975 = vmatmul.mubr.bf16.gmra.mrb[0].mxu0 %v321
    %v976 = vpop.f32.mrb[0].mxu0
    %v977 = vadd.f32 %v932, %v976
    %v978 = vpop.f32.mrb[0].mxu0
    %v979 = vpop.f32.mrb[0].mxu0
    %v980 = vadd.f32 %v932, %v979
    %v981 = vpop.f32.mrb[0].mxu0
    %982 = vmatprep.mubr.bf16.mxu0 0
    %983 = vmatmul.mubr.bf16.gmra.mrb[0].mxu0 %v322
    %v984 = vpop.f32.mrb[0].mxu0
    %v985 = vadd.f32 %v932, %v984
    %v986 = vpop.f32.mrb[0].mxu0
    %v987 = vpop.f32.mrb[0].mxu0
    %v988 = vadd.f32 %v932, %v987
    %v989 = vpop.f32.mrb[0].mxu0
    %990 = vmatprep.mubr.bf16.mxu0 0
    %991 = vmatmul.mubr.bf16.gmra.mrb[0].mxu0 %v323
    %v992 = vpop.f32.mrb[0].mxu0
    %v993 = vadd.f32 %v932, %v992
    %v994 = vpop.f32.mrb[0].mxu0
    %v995 = vpop.f32.mrb[0].mxu0
    %v996 = vadd.f32 %v932, %v995
    %v997 = vpop.f32.mrb[0].mxu0
    %998 = vmatprep.mubr.bf16.mxu0 0
    %999 = vmatmul.mubr.bf16.gmra.mrb[0].mxu0 %v324
    %v1000 = vpop.f32.mrb[0].mxu0
    %v1001 = vadd.f32 %v932, %v1000
    %v1002 = vpop.f32.mrb[0].mxu0
    %v1003 = vpop.f32.mrb[0].mxu0
    %v1004 = vadd.f32 %v932, %v1003
    %v1005 = vpop.f32.mrb[0].mxu0
    %1006 = vmatprep.mubr.bf16.mxu0 0
    %1007 = vmatmul.mubr.bf16.gmra.mrb[0].mxu0 %v325
    %v1008 = vpop.f32.mrb[0].mxu0
    %v1009 = vadd.f32 %v932, %v1008
    %v1010 = vpop.f32.mrb[0].mxu0
    %v1011 = vpop.f32.mrb[0].mxu0
    %v1012 = vadd.f32 %v932, %v1011
    %v1013 = vpop.f32.mrb[0].mxu0
    %1014 = vmatprep.mubr.bf16.mxu0 0
    %1015 = vmatmul.mubr.bf16.gmra.mrb[0].mxu0 %v326
    %v1016 = vpop.f32.mrb[0].mxu0
    %v1017 = vadd.f32 %v932, %v1016
    %v1018 = vpop.f32.mrb[0].mxu0
    %v1019 = vpop.f32.mrb[0].mxu0
    %v1020 = vadd.f32 %v932, %v1019
    %v1021 = vpop.f32.mrb[0].mxu0
    %1022 = vmatprep.mubr.bf16.mxu0 0
    %1023 = vmatmul.mubr.bf16.gmra.mrb[0].mxu0 %v327
    %v1024 = vpop.f32.mrb[0].mxu0
    %v1025 = vadd.f32 %v932, %v1024
    %v1026 = vpop.f32.mrb[0].mxu0
    %v1027 = vpop.f32.mrb[0].mxu0
    %v1028 = vadd.f32 %v932, %v1027
    %v1029 = vpop.f32.mrb[0].mxu0
    %1030 = vdwg.mxu0
    %1031 = vst [vmem:[%s4] sm:$0xff] %v969
    %1032 = vst [vmem:[%s4 + $0x8] sm:$0xff] %v972
    %1033 = vst [vmem:[%s4 + $0x10] sm:$0xff] %v977
    %1034 = vst [vmem:[%s4 + $0x18] sm:$0xff] %v980
    %1035 = vst [vmem:[%s4 + $0x20] sm:$0xff] %v985
    %1036 = vst [vmem:[%s4 + $0x28] sm:$0xff] %v988
    %1037 = vst [vmem:[%s4 + $0x30] sm:$0xff] %v993
    %1038 = vst [vmem:[%s4 + $0x38] sm:$0xff] %v996
    %1039 = vst [vmem:[%s4 + $0x40] sm:$0xff] %v1001
    %1040 = vst [vmem:[%s4 + $0x48] sm:$0xff] %v1004
    %1041 = vst [vmem:[%s4 + $0x50] sm:$0xff] %v1009
    %1042 = vst [vmem:[%s4 + $0x58] sm:$0xff] %v1012
    %1043 = vst [vmem:[%s4 + $0x60] sm:$0xff] %v1017
    %1044 = vst [vmem:[%s4 + $0x68] sm:$0xff] %v1020
    %1045 = vst [vmem:[%s4 + $0x70] sm:$0xff] %v1025
    %1046 = vst [vmem:[%s4 + $0x78] sm:$0xff] %v1028
    // Predicated region
    $region22: #{multigcn_forward.1} parent=1 // pred_check
      _
    $region23: #{multigcn_forward.1} parent=1 // pred_check_branch
      %1048 = sbr.rel (0) target = $region25
    $region24: #{multigcn_forward.1} parent=1 // pred_region
      _
    $region25: #{multigcn_forward.1} parent=1 // pred_fallthru
      _
    // Predicated region
    $region26: #{multigcn_forward.1} parent=1 // pred_check
      _
    $region27: #{multigcn_forward.1} parent=1 // pred_check_branch
      %1050 = sbr.rel (0) target = $region29
    $region28: #{multigcn_forward.1} parent=1 // pred_region
      _
    $region29: #{multigcn_forward.1} parent=1 // pred_fallthru
      _
    %1051 = vsyncpa [#allocation3], 1

</llo_original>
